<compile_context>
chip_gen: v5e
topology: v5e:2x2
jax: 0.10.0
libtpu: 0.0.40
codegen_flags: <defaults>
</compile_context>

<pallas_src>
import functools

import jax
import jax.numpy as jnp
from jax import lax
from jax.experimental import pallas as pl
from jax.experimental.pallas import tpu as pltpu

EPS = 1e-5
LANES = 128


def _round_up(x, m):
    return (x + m - 1) // m * m


def _row(sb, i, c):
    # row i of an (8, C) value as a (1, 1, C) broadcastable slab
    return sb[i:i + 1, :].reshape(1, 1, c)


def _vmem_limit_bytes():
    # generation-aware: ~96 MiB on v5e/v6e (128 MiB physical), ~48 MiB on v7x (64 MiB)
    cap = 64 * 1024 * 1024
    try:
        info_fn = getattr(pltpu, "get_tpu_info", None)
        if info_fn is not None:
            cap = int(getattr(info_fn(), "vmem_capacity_bytes", cap))
    except Exception:
        pass
    return max(32 * 1024 * 1024, min(cap * 3 // 4, 100 * 1024 * 1024))


def _pick_batch_tile(n, rows_per_sample, cmax, vmem_limit):
    # ~12 resident bf16 activation buffers of `cmax` lanes per row across the
    # three phases (double-buffered I/O + pad scratch); keep the per-step tile
    # around half the VMEM limit, capped at ~8K rows/step.
    rows_cap = max(256, min(8192, vmem_limit // (24 * max(cmax, 1))))
    nt = max(1, rows_cap // max(rows_per_sample, 1))
    if n >= 2:
        nt = min(nt, (n + 1) // 2)      # guarantee >= 2 grid steps (v7x megacore)
    nt = min(nt, max(n, 1))
    # prefer an exact divisor of n (no batch padding) when it is close to the cap
    best_div = 1
    for d in range(1, nt + 1):
        if n % d == 0:
            best_div = d
    return best_div if best_div * 2 >= nt else nt


# --------------------------------- kernels -----------------------------------

def _phase1_kernel(*refs, stride, has_proj, deinterleaved):
    # inputs : x (or even/odd planes) bf16, fused conv1 weight, [1x1 shortcut w]
    # outputs: h1 (pre-BN, bf16), [shortcut conv out (pre-BN, bf16)], per-tile stats
    idx = 0
    if deinterleaved:
        xe_ref, xo_ref = refs[0], refs[1]
        idx = 2
    else:
        x_ref = refs[0]
        idx = 1
    w1_ref = refs[idx]
    idx += 1
    if has_proj:
        wsc_ref = refs[idx]
        h1_ref, sc_ref, st_ref = refs[idx + 1], refs[idx + 2], refs[idx + 3]
    else:
        h1_ref, st_ref = refs[idx], refs[idx + 1]

    nt, lout, cpo = h1_ref.shape
    cpi = w1_ref.shape[0] // 3

    if deinterleaved:                       # stride == 2: contiguous tap loads
        t0 = xe_ref[:, 0:lout, :]
        t1 = xo_ref[...]
        t2 = xe_ref[:, 1:lout + 1, :]
    elif stride == 1:
        t0 = x_ref[:, 0:lout, :]
        t1 = x_ref[:, 1:lout + 1, :]
        t2 = x_ref[:, 2:lout + 2, :]
    else:                                   # rare stride > 2 fallback
        t0 = x_ref[:, pl.ds(0, lout, stride), :]
        t1 = x_ref[:, pl.ds(1, lout, stride), :]
        t2 = x_ref[:, pl.ds(2, lout, stride), :]
    t0 = t0.reshape(nt * lout, cpi)
    t1 = t1.reshape(nt * lout, cpi)
    t2 = t2.reshape(nt * lout, cpi)

    # conv1: three accumulating MXU dots against static weight-ref slices
    # (no (rows, 3C) im2col copy); bf16 operands, f32 accumulation.
    h1 = jnp.dot(t0, w1_ref[0:cpi, :], preferred_element_type=jnp.float32)
    h1 = h1 + jnp.dot(t1, w1_ref[cpi:2 * cpi, :], preferred_element_type=jnp.float32)
    h1 = h1 + jnp.dot(t2, w1_ref[2 * cpi:3 * cpi, :], preferred_element_type=jnp.float32)
    h1_ref[...] = h1.reshape(nt, lout, cpo).astype(jnp.bfloat16)

    s1 = jnp.sum(h1, axis=0, keepdims=True)
    q1 = jnp.sum(h1 * h1, axis=0, keepdims=True)
    if has_proj:
        # 1x1 strided shortcut conv reuses the center tap (no extra x copy)
        sc = jnp.dot(t1, wsc_ref[...], preferred_element_type=jnp.float32)
        sc_ref[...] = sc.reshape(nt, lout, cpo).astype(jnp.bfloat16)
        s3 = jnp.sum(sc, axis=0, keepdims=True)
        q3 = jnp.sum(sc * sc, axis=0, keepdims=True)
        st_ref[...] = jnp.concatenate(
            [s1, q1, s3, q3, jnp.zeros((4, cpo), jnp.float32)], axis=0)
    else:
        st_ref[...] = jnp.concatenate(
            [s1, q1, jnp.zeros((6, cpo), jnp.float32)], axis=0)


def _phase2_kernel(h1_ref, sb1_ref, w2_ref, h2_ref, st_ref, pad_ref, *,
                   n_valid, needs_mask):
    # folded bn1 + relu + conv2 + per-tile BN2 stats
    nt, lout, cpo = h1_ref.shape
    sb = sb1_ref[...]
    a1 = jnp.maximum(h1_ref[...].astype(jnp.float32) * _row(sb, 0, cpo)
                     + _row(sb, 1, cpo), 0.0)
    if needs_mask:
        # zero batch-padding samples so they do not pollute the BN2 statistics
        sample = (pl.program_id(0) * nt
                  + lax.broadcasted_iota(jnp.int32, (nt, 1, 1), 0))
        a1 = jnp.where(sample < n_valid, a1, 0.0)
    a1_bf = a1.astype(jnp.bfloat16)

    # zero-padded activation in a bf16 VMEM scratch; taps are contiguous loads.
    # NOTE: halo rows are re-zeroed every step on purpose -- with
    # dimension_semantics=("parallel",) the grid may be split across
    # TensorCores and a "first step only" guard would never run on core 1.
    pad_ref[:, 0:1, :] = jnp.zeros((nt, 1, cpo), jnp.bfloat16)
    pad_ref[:, lout + 1:lout + 2, :] = jnp.zeros((nt, 1, cpo), jnp.bfloat16)
    pad_ref[:, 1:lout + 1, :] = a1_bf

    p0 = pad_ref[:, 0:lout, :].reshape(nt * lout, cpo)
    p1 = a1_bf.reshape(nt * lout, cpo)          # center tap: reuse the live value
    p2 = pad_ref[:, 2:lout + 2, :].reshape(nt * lout, cpo)

    h2 = jnp.dot(p0, w2_ref[0:cpo, :], preferred_element_type=jnp.float32)
    h2 = h2 + jnp.dot(p1, w2_ref[cpo:2 * cpo, :], preferred_element_type=jnp.float32)
    h2 = h2 + jnp.dot(p2, w2_ref[2 * cpo:3 * cpo, :], preferred_element_type=jnp.float32)
    h2_ref[...] = h2.reshape(nt, lout, cpo).astype(jnp.bfloat16)

    s2 = jnp.sum(h2, axis=0, keepdims=True)
    q2 = jnp.sum(h2 * h2, axis=0, keepdims=True)
    st_ref[...] = jnp.concatenate([s2, q2, jnp.zeros((6, cpo), jnp.float32)], axis=0)


def _phase3_kernel(h2_ref, res_ref, sb_ref, y_ref, *, identity):
    # folded bn2 + shortcut add + relu; bf16 lane-dense channels-last output
    _, lout, cpo = h2_ref.shape
    sb = sb_ref[...]
    out = h2_ref[...].astype(jnp.float32) * _row(sb, 0, cpo) + _row(sb, 1, cpo)
    if identity:
        out = out + res_ref[:, 1:lout + 1, :].astype(jnp.float32)
    else:
        out = (out + res_ref[...].astype(jnp.float32) * _row(sb, 2, cpo)
               + _row(sb, 3, cpo))
    y_ref[...] = jnp.maximum(out, 0.0).astype(y_ref.dtype)


# --------------------------------- wrapper -----------------------------------

def basic_block_forward(x, params, stride):
    """x: (N, Cin, L) float32 (PyTorch NCL).  Returns (N, Cout, Lout) float32."""
    n, cin, l = x.shape
    w1 = params["w1"]                      # (Cout, Cin, 3)
    cout = w1.shape[0]
    lout = (l - 1) // stride + 1
    cpi = _round_up(cin, LANES)
    cpo = _round_up(cout, LANES)
    has_proj = (stride != 1) or (cin != cout)
    deinterleaved = (stride == 2)

    vmem_limit = _vmem_limit_bytes()
    nt = _pick_batch_tile(n, max(l + 2, lout + 2), max(cpi, cpo), vmem_limit)
    n_pad = _round_up(n, nt)
    grid = (n_pad // nt,)
    cparams = pltpu.CompilerParams(dimension_semantics=("parallel",),
                                   vmem_limit_bytes=vmem_limit)

    # ---- layout glue: one channels-last bf16 copy of x (L+1 pad, C->128, N->n_pad)
    x_nlc = jnp.transpose(x, (0, 2, 1))
    x_bf = jnp.pad(x_nlc.astype(jnp.bfloat16),
                   ((0, n_pad - n), (1, 1), (0, cpi - cin)))      # (n_pad, L+2, Cpi)
    if deinterleaved:
        # stride-2 taps become contiguous loads of even/odd L planes
        xe = x_bf[:, 0:2 * lout + 1:2, :]                         # (n_pad, Lout+1, Cpi)
        xo = x_bf[:, 1:2 * lout:2, :]                             # (n_pad, Lout,   Cpi)

    # ---- weights: fused 3-tap layout, channel-padded, bf16 MXU operands
    w1f = jnp.pad(jnp.transpose(w1, (2, 1, 0)),
                  ((0, 0), (0, cpi - cin), (0, cpo - cout)))
    w1f = w1f.reshape(3 * cpi, cpo).astype(jnp.bfloat16)
    w2f = jnp.pad(jnp.transpose(params["w2"], (2, 1, 0)),
                  ((0, 0), (0, cpo - cout), (0, cpo - cout)))
    w2f = w2f.reshape(3 * cpo, cpo).astype(jnp.bfloat16)

    def padc(v):
        return jnp.pad(v.astype(jnp.float32), (0, cpo - cout))

    g1, b1 = padc(params["g1"]), padc(params["b1"])
    g2, b2 = padc(params["g2"]), padc(params["b2"])

    full2d = lambda shape: pl.BlockSpec(shape, lambda i: (0, 0))
    tile3d = lambda s0, s1, s2: pl.BlockSpec((s0, s1, s2), lambda i: (i, 0, 0))
    stat_spec = pl.BlockSpec((8, cpo), lambda i: (i, 0))
    stat_shape = jax.ShapeDtypeStruct((grid[0] * 8, cpo), jnp.float32)
    act_shape = jax.ShapeDtypeStruct((n_pad, lout, cpo), jnp.bfloat16)
    act_spec = tile3d(nt, lout, cpo)

    # -------- phase 1: conv1 (+ shortcut conv) + per-tile BN stats --------------
    p1_kernel = functools.partial(_phase1_kernel, stride=stride,
                                  has_proj=has_proj, deinterleaved=deinterleaved)
    if deinterleaved:
        p1_in = [tile3d(nt, lout + 1, cpi), tile3d(nt, lout, cpi)]
        p1_args = [xe, xo]
    else:
        p1_in = [tile3d(nt, l + 2, cpi)]
        p1_args = [x_bf]
    p1_in.append(full2d((3 * cpi, cpo)))
    p1_args.append(w1f)
    p1_out_shape, p1_out_specs = [act_shape], [act_spec]
    if has_proj:
        wsc = jnp.pad(params["wsc"][:, :, 0].T, ((0, cpi - cin), (0, cpo - cout)))
        p1_in.append(full2d((cpi, cpo)))
        p1_args.append(wsc.astype(jnp.bfloat16))
        p1_out_shape.append(act_shape)
        p1_out_specs.append(act_spec)
    p1_out_shape.append(stat_shape)
    p1_out_specs.append(stat_spec)

    p1_res = pl.pallas_call(
        p1_kernel, grid=grid, in_specs=p1_in,
        out_specs=tuple(p1_out_specs), out_shape=tuple(p1_out_shape),
        compiler_params=cparams)(*p1_args)
    if has_proj:
        h1, sc_pre, st1 = p1_res
    else:
        h1, st1 = p1_res
        sc_pre = None
    st1 = st1.reshape(grid[0], 8, cpo).sum(axis=0)

    cnt = jnp.float32(n * lout)

    # TODO(synk): E[x^2]-E[x]^2 can cancel when |mean| >> std; a shifted/Welford
    # variance would be safer for extreme activation statistics.
    def fold_bn(s, q, gamma, beta):
        mean = s / cnt
        var = jnp.maximum(q / cnt - mean * mean, 0.0)
        scale = gamma * lax.rsqrt(var + EPS)
        return scale, beta - mean * scale

    scale1, bias1 = fold_bn(st1[0], st1[1], g1, b1)
    zeros6 = jnp.zeros((6, cpo), jnp.float32)
    sb1 = jnp.concatenate([scale1[None], bias1[None], zeros6], axis=0)

    # -------- phase 2: folded bn1 + relu + conv2 + per-tile BN2 stats -----------
    p2_kernel = functools.partial(_phase2_kernel, n_valid=n,
                                  needs_mask=(n_pad != n))
    h2, st2 = pl.pallas_call(
        p2_kernel, grid=grid,
        in_specs=[act_spec, full2d((8, cpo)), full2d((3 * cpo, cpo))],
        out_specs=(act_spec, stat_spec),
        out_shape=(act_shape, stat_shape),
        scratch_shapes=[pltpu.VMEM((nt, lout + 2, cpo), jnp.bfloat16)],
        compiler_params=cparams)(h1, sb1, w2f)
    st2 = st2.reshape(grid[0], 8, cpo).sum(axis=0)
    scale2, bias2 = fold_bn(st2[0], st2[1], g2, b2)

    if has_proj:
        scale_sc, bias_sc = fold_bn(st1[2], st1[3],
                                    padc(params["gsc"]), padc(params["bsc"]))
        sb3 = jnp.concatenate([scale2[None], bias2[None], scale_sc[None],
                               bias_sc[None], jnp.zeros((4, cpo), jnp.float32)],
                              axis=0)
        res, res_spec = sc_pre, act_spec
    else:
        # identity residual re-reads the same bf16 padded x used by phase 1
        sb3 = jnp.concatenate([scale2[None], bias2[None], zeros6], axis=0)
        res, res_spec = x_bf, tile3d(nt, l + 2, cpi)

    # -------- phase 3: folded bn2 + shortcut add + relu -------------------------
    p3_kernel = functools.partial(_phase3_kernel, identity=not has_proj)
    y_pad = pl.pallas_call(
        p3_kernel, grid=grid,
        in_specs=[act_spec, res_spec, full2d((8, cpo))],
        out_specs=act_spec, out_shape=act_shape,
        compiler_params=cparams)(h2, res, sb3)

    # TODO(synk): for stacked blocks keep the bf16 (N, L, Cpad) channels-last
    # output and skip this slice/cast/transpose back to the PyTorch NCL layout.
    return jnp.transpose(y_pad[:n, :, :cout].astype(jnp.float32), (0, 2, 1))


# ------------------------ pure-JAX reference (f32) ----------------------------

def basic_block_ref(x, params, stride):
    def conv(h, w, s, p):
        return lax.conv_general_dilated(h, w, window_strides=(s,), padding=[(p, p)],
                                        dimension_numbers=("NCH", "OIH", "NCH"))

    def bn(h, g, b):
        mean = jnp.mean(h, axis=(0, 2), keepdims=True)
        var = jnp.mean((h - mean) ** 2, axis=(0, 2), keepdims=True)
        return (h - mean) / jnp.sqrt(var + EPS) * g[None, :, None] + b[None, :, None]

    out = jax.nn.relu(bn(conv(x, params["w1"], stride, 1), params["g1"], params["b1"]))
    out = bn(conv(out, params["w2"], 1, 1), params["g2"], params["b2"])
    if "wsc" in params:
        sc = bn(conv(x, params["wsc"], stride, 0), params["gsc"], params["bsc"])
    else:
        sc = x
    return jax.nn.relu(out + sc)


# ------------------------------ param init ------------------------------------

def init_params(key, cin, cout, stride):
    ks = jax.random.split(key, 9)
    p = {
        "w1": 0.2 * jax.random.normal(ks[0], (cout, cin, 3), jnp.float32),
        "g1": 1.0 + 0.1 * jax.random.normal(ks[1], (cout,), jnp.float32),
        "b1": 0.1 * jax.random.normal(ks[2], (cout,), jnp.float32),
        "w2": 0.2 * jax.random.normal(ks[3], (cout, cout, 3), jnp.float32),
        "g2": 1.0 + 0.1 * jax.random.normal(ks[4], (cout,), jnp.float32),
        "b2": 0.1 * jax.random.normal(ks[5], (cout,), jnp.float32),
    }
    if stride != 1 or cin != cout:
        p["wsc"] = 0.2 * jax.random.normal(ks[6], (cout, cin, 1), jnp.float32)
        p["gsc"] = 1.0 + 0.1 * jax.random.normal(ks[7], (cout,), jnp.float32)
        p["bsc"] = 0.1 * jax.random.normal(ks[8], (cout,), jnp.float32)
    return p


if __name__ == "__main__":
    key = jax.random.PRNGKey(0)
    kx, kp1, kp2 = jax.random.split(key, 3)

    # Case 1: projection shortcut (in=4, out=8, stride=2), x: (2, 4, 16)
    x = jax.random.normal(kx, (2, 4, 16), jnp.float32)
    p1 = init_params(kp1, 4, 8, 2)
    y1 = jax.block_until_ready(basic_block_forward(x, p1, 2))
    r1 = basic_block_ref(x, p1, 2)
    assert y1.shape == (2, 8, 8), y1.shape
    # bf16 activations/operands (f32 accumulate) -> relaxed tolerance vs f32 ref
    assert jnp.allclose(y1, r1, atol=5e-2, rtol=5e-2), float(jnp.max(jnp.abs(y1 - r1)))

    # Case 2: identity shortcut (in=out=4, stride=1)
    p2 = init_params(kp2, 4, 4, 1)
    y2 = jax.block_until_ready(basic_block_forward(x, p2, 1))
    r2 = basic_block_ref(x, p2, 1)
    assert y2.shape == (2, 4, 16), y2.shape
    assert jnp.allclose(y2, r2, atol=5e-2, rtol=5e-2), float(jnp.max(jnp.abs(y2 - r2)))

    print("KERNEL_OK")
</pallas_src>

<mosaic_0001>
module attributes {stable_mosaic.version = 11 : i64} {
  func.func @_phase1_kernel(%arg0: i32, %arg1: memref<1x9x128xbf16, #tpu.memory_space<vmem>>, %arg2: memref<1x8x128xbf16, #tpu.memory_space<vmem>>, %arg3: memref<384x128xbf16, #tpu.memory_space<vmem>>, %arg4: memref<128x128xbf16, #tpu.memory_space<vmem>>, %arg5: memref<1x8x128xbf16, #tpu.memory_space<vmem>>, %arg6: memref<1x8x128xbf16, #tpu.memory_space<vmem>>, %arg7: memref<8x128xf32, #tpu.memory_space<vmem>>) attributes {dimension_semantics = [#tpu.dimension_semantics<parallel>], iteration_bounds = array<i64: 2>, scalar_prefetch = 0 : i64, scratch_operands = 0 : i64, tpu.core_type = #tpu.core_type<tc>, window_params = [{transform_indices = @transform_0, window_bounds = array<i64: 1, 9, 128>}, {transform_indices = @transform_1, window_bounds = array<i64: 1, 8, 128>}, {pipeline_mode = #tpu.pipeline_mode<synchronous>, transform_indices = @transform_2, window_bounds = array<i64: 384, 128>}, {pipeline_mode = #tpu.pipeline_mode<synchronous>, transform_indices = @transform_3, window_bounds = array<i64: 128, 128>}, {transform_indices = @transform_4, window_bounds = array<i64: 1, 8, 128>}, {transform_indices = @transform_5, window_bounds = array<i64: 1, 8, 128>}, {transform_indices = @transform_6, window_bounds = array<i64: 8, 128>}]} {
    %c0 = arith.constant 0 : index
    %c0_0 = arith.constant 0 : index
    %c0_1 = arith.constant 0 : index
    %0 = vector.load %arg1[%c0, %c0_0, %c0_1] : memref<1x9x128xbf16, #tpu.memory_space<vmem>>, vector<1x8x128xbf16>
    %c0_2 = arith.constant 0 : index
    %c0_3 = arith.constant 0 : index
    %c0_4 = arith.constant 0 : index
    %1 = vector.load %arg2[%c0_2, %c0_3, %c0_4] : memref<1x8x128xbf16, #tpu.memory_space<vmem>>, vector<1x8x128xbf16>
    %c0_5 = arith.constant 0 : index
    %c1 = arith.constant 1 : index
    %c0_6 = arith.constant 0 : index
    %2 = vector.load %arg1[%c0_5, %c1, %c0_6] : memref<1x9x128xbf16, #tpu.memory_space<vmem>>, vector<1x8x128xbf16>
    %3 = vector.shape_cast %0 : vector<1x8x128xbf16> to vector<8x128xbf16>
    %4 = vector.shape_cast %1 : vector<1x8x128xbf16> to vector<8x128xbf16>
    %5 = vector.shape_cast %2 : vector<1x8x128xbf16> to vector<8x128xbf16>
    %c0_7 = arith.constant 0 : index
    %c0_8 = arith.constant 0 : index
    %6 = vector.load %arg3[%c0_7, %c0_8] : memref<384x128xbf16, #tpu.memory_space<vmem>>, vector<128x128xbf16>
    %cst = arith.constant dense<0.000000e+00> : vector<8x128xf32>
    %7 = tpu.matmul %3, %6, %cst {dimension_numbers = #tpu.dot_dimension_numbers<[1], [0], [0], [1], [0, 0, 1, 1], [], []>} : vector<8x128xbf16>, vector<128x128xbf16>, vector<8x128xf32> -> vector<8x128xf32>
    %c128 = arith.constant 128 : index
    %c0_9 = arith.constant 0 : index
    %8 = vector.load %arg3[%c128, %c0_9] : memref<384x128xbf16, #tpu.memory_space<vmem>>, vector<128x128xbf16>
    %cst_10 = arith.constant dense<0.000000e+00> : vector<8x128xf32>
    %9 = tpu.matmul %4, %8, %cst_10 {dimension_numbers = #tpu.dot_dimension_numbers<[1], [0], [0], [1], [0, 0, 1, 1], [], []>} : vector<8x128xbf16>, vector<128x128xbf16>, vector<8x128xf32> -> vector<8x128xf32>
    %10 = arith.addf %7, %9 : vector<8x128xf32>
    %c256 = arith.constant 256 : index
    %c0_11 = arith.constant 0 : index
    %11 = vector.load %arg3[%c256, %c0_11] : memref<384x128xbf16, #tpu.memory_space<vmem>>, vector<128x128xbf16>
    %cst_12 = arith.constant dense<0.000000e+00> : vector<8x128xf32>
    %12 = tpu.matmul %5, %11, %cst_12 {dimension_numbers = #tpu.dot_dimension_numbers<[1], [0], [0], [1], [0, 0, 1, 1], [], []>} : vector<8x128xbf16>, vector<128x128xbf16>, vector<8x128xf32> -> vector<8x128xf32>
    %13 = arith.addf %10, %12 : vector<8x128xf32>
    %14 = vector.shape_cast %13 : vector<8x128xf32> to vector<1x8x128xf32>
    %15 = arith.truncf %14 : vector<1x8x128xf32> to vector<1x8x128xbf16>
    %c0_13 = arith.constant 0 : index
    %c0_14 = arith.constant 0 : index
    %c0_15 = arith.constant 0 : index
    %16 = vector.load %arg5[%c0_13, %c0_14, %c0_15] : memref<1x8x128xbf16, #tpu.memory_space<vmem>>, vector<1x8x128xbf16>
    tpu.vector_store %arg5[%c0_13, %c0_14, %c0_15], %15 {strides = array<i32>} : memref<1x8x128xbf16, #tpu.memory_space<vmem>>, vector<1x8x128xbf16>,
    %cst_16 = arith.constant dense<0.000000e+00> : vector<128xf32>
    %17 = vector.multi_reduction <add>, %13, %cst_16 [0] : vector<8x128xf32> to vector<128xf32>
    %18 = vector.shape_cast %17 : vector<128xf32> to vector<1x128xf32>
    %19 = arith.mulf %13, %13 : vector<8x128xf32>
    %cst_17 = arith.constant dense<0.000000e+00> : vector<128xf32>
    %20 = vector.multi_reduction <add>, %19, %cst_17 [0] : vector<8x128xf32> to vector<128xf32>
    %21 = vector.shape_cast %20 : vector<128xf32> to vector<1x128xf32>
    %c0_18 = arith.constant 0 : index
    %c0_19 = arith.constant 0 : index
    %22 = vector.load %arg4[%c0_18, %c0_19] : memref<128x128xbf16, #tpu.memory_space<vmem>>, vector<128x128xbf16>
    %cst_20 = arith.constant dense<0.000000e+00> : vector<8x128xf32>
    %23 = tpu.matmul %4, %22, %cst_20 {dimension_numbers = #tpu.dot_dimension_numbers<[1], [0], [0], [1], [0, 0, 1, 1], [], []>} : vector<8x128xbf16>, vector<128x128xbf16>, vector<8x128xf32> -> vector<8x128xf32>
    %24 = vector.shape_cast %23 : vector<8x128xf32> to vector<1x8x128xf32>
    %25 = arith.truncf %24 : vector<1x8x128xf32> to vector<1x8x128xbf16>
    %c0_21 = arith.constant 0 : index
    %c0_22 = arith.constant 0 : index
    %c0_23 = arith.constant 0 : index
    %26 = vector.load %arg6[%c0_21, %c0_22, %c0_23] : memref<1x8x128xbf16, #tpu.memory_space<vmem>>, vector<1x8x128xbf16>
    tpu.vector_store %arg6[%c0_21, %c0_22, %c0_23], %25 {strides = array<i32>} : memref<1x8x128xbf16, #tpu.memory_space<vmem>>, vector<1x8x128xbf16>,
    %cst_24 = arith.constant dense<0.000000e+00> : vector<128xf32>
    %27 = vector.multi_reduction <add>, %23, %cst_24 [0] : vector<8x128xf32> to vector<128xf32>
    %28 = vector.shape_cast %27 : vector<128xf32> to vector<1x128xf32>
    %29 = arith.mulf %23, %23 : vector<8x128xf32>
    %cst_25 = arith.constant dense<0.000000e+00> : vector<128xf32>
    %30 = vector.multi_reduction <add>, %29, %cst_25 [0] : vector<8x128xf32> to vector<128xf32>
    %31 = vector.shape_cast %30 : vector<128xf32> to vector<1x128xf32>
    %cst_26 = arith.constant 0.000000e+00 : f32
    %32 = vector.broadcast %cst_26 : f32 to vector<4x128xf32>
    %33 = tpu.concatenate %18, %21, %28, %31, %32 in 0 : vector<1x128xf32>, vector<1x128xf32>, vector<1x128xf32>, vector<1x128xf32>, vector<4x128xf32> -> vector<8x128xf32>
    %c0_27 = arith.constant 0 : index
    %c0_28 = arith.constant 0 : index
    %34 = vector.load %arg7[%c0_27, %c0_28] : memref<8x128xf32, #tpu.memory_space<vmem>>, vector<8x128xf32>
    tpu.vector_store %arg7[%c0_27, %c0_28], %33 {strides = array<i32>} : memref<8x128xf32, #tpu.memory_space<vmem>>, vector<8x128xf32>,
    return
  }
  func.func @transform_0(%arg0: i32) -> (i32, i32, i32) {
    %c0_i32 = arith.constant 0 : i32
    %c0_i32_0 = arith.constant 0 : i32
    %c0_i32_1 = arith.constant 0 : i32
    return %arg0, %c0_i32, %c0_i32_0 : i32, i32, i32
  }
  func.func @transform_1(%arg0: i32) -> (i32, i32, i32) {
    %c0_i32 = arith.constant 0 : i32
    %c0_i32_0 = arith.constant 0 : i32
    %c0_i32_1 = arith.constant 0 : i32
    return %arg0, %c0_i32, %c0_i32_0 : i32, i32, i32
  }
  func.func @transform_2(%arg0: i32) -> (i32, i32) {
    %c0_i32 = arith.constant 0 : i32
    %c0_i32_0 = arith.constant 0 : i32
    %c0_i32_1 = arith.constant 0 : i32
    return %c0_i32, %c0_i32_0 : i32, i32
  }
  func.func @transform_3(%arg0: i32) -> (i32, i32) {
    %c0_i32 = arith.constant 0 : i32
    %c0_i32_0 = arith.constant 0 : i32
    %c0_i32_1 = arith.constant 0 : i32
    return %c0_i32, %c0_i32_0 : i32, i32
  }
  func.func @transform_4(%arg0: i32) -> (i32, i32, i32) {
    %c0_i32 = arith.constant 0 : i32
    %c0_i32_0 = arith.constant 0 : i32
    %c0_i32_1 = arith.constant 0 : i32
    return %arg0, %c0_i32, %c0_i32_0 : i32, i32, i32
  }
  func.func @transform_5(%arg0: i32) -> (i32, i32, i32) {
    %c0_i32 = arith.constant 0 : i32
    %c0_i32_0 = arith.constant 0 : i32
    %c0_i32_1 = arith.constant 0 : i32
    return %arg0, %c0_i32, %c0_i32_0 : i32, i32, i32
  }
  func.func @transform_6(%arg0: i32) -> (i32, i32) {
    %c0_i32 = arith.constant 0 : i32
    %c0_i32_0 = arith.constant 0 : i32
    return %arg0, %c0_i32 : i32, i32
  }
}

</mosaic_0001>

<llo_original>
// kernel: tpu_custom_call.1
$region0: #{tpu_custom_call.1}
  #allocation0 [shape = 'u32[]', space=smem, size = 0x4, offset = 0x4, fixed_abs, tag = 'smem constant byte address 0x4 - core index']
  #allocation1 [shape = 'u32[72,128]{1,0:T(1,128)}', space=vmem, size = 0x9000, scoped, tag = 'internal scratch']
  %s0 = inlined_call_operand.vmem [shape: bf16[2,9,128], index: 0, kind: input, shape index: {}]
  %s1 = inlined_call_operand.vmem [shape: bf16[2,8,128], index: 1, kind: input, shape index: {}]
  %s2 = inlined_call_operand.hbm [shape: bf16[384,128], index: 2, kind: input, shape index: {}]
  %s3 = inlined_call_operand.hbm [shape: bf16[128,128], index: 3, kind: input, shape index: {}]
  %s4 = inlined_call_operand.hbm [shape: bf16[2,8,128], index: 4, kind: output, shape index: {0}]
  %s5 = inlined_call_operand.hbm [shape: bf16[2,8,128], index: 5, kind: output, shape index: {1}]
  %s6 = inlined_call_operand.hbm [shape: f32[16,128], index: 6, kind: output, shape index: {2}]
  %7 = xla_tuple %s4, %s5, %s6
  %s8 = sld [smem:[#allocation0]]
  $region73: #{tpu_custom_call.1} parent=0
    _
  %s10 = ssub.s32 1, %s8
  %s11 = scalar_select 0, %s10, %s8
  $region1: #{tpu_custom_call.1} parent=0
    #allocation2 [shape = 'u8[98304]{0}', space=vmem, size = 0x18000, scoped, tag = 'input window, operand 2, single buffered']
    #allocation3 [shape = 's32[2]{0}', space=sflag, size = 0x8, scoped, tag = 'scoped memory for tpu_custom_call.1']
    #allocation4 [shape = 's32[2]{0}', space=sflag, size = 0x8, scoped, tag = 'scoped memory for tpu_custom_call.1']
    #allocation5 [shape = 'u8[32768]{0}', space=vmem, size = 0x8000, scoped, tag = 'input window, operand 3, single buffered']
    #allocation6 [shape = 's32[1]{0}', space=sflag, size = 0x4, scoped, tag = 'scoped memory for tpu_custom_call.1']
    #allocation7 [shape = 'u8[4096]{0}', space=vmem, size = 0x1000, scoped, tag = 'output window, operand 0']
    #allocation8 [shape = 'u8[4096]{0}', space=vmem, size = 0x1000, scoped, tag = 'output window, operand 1']
    #allocation9 [shape = 's32[2]{0}', space=sflag, size = 0x8, scoped, tag = 'scoped memory for tpu_custom_call.1']
    #allocation10 [shape = 'u8[8192]{0}', space=vmem, size = 0x2000, scoped, tag = 'output window, operand 2']
    %12 = vsyncpa [#allocation3], 0
    %13 = vsyncpa [#allocation6], 0
    %14 = vsyncpa [#allocation4], 0
    %s15 = scalar_lea.sflag [#allocation4], 1
    %16 = vsyncpa %s15, 0
    %17 = vsyncpa [#allocation9], 0
    %s18 = scalar_lea.sflag [#allocation9], 1
    %19 = vsyncpa %s18, 0
    loop: start=0, step=1, limit=4
    $region2: #{tpu_custom_call.1} parent=1 // loop_pre_header
      _
    $region3: #{tpu_custom_call.1} parent=1 // loop_header
      %s21 = sphi 0, %s25
      %p22 = scmp.ge.s32.totalorder %s21, 4
      %s31 = sphi 0, %s33
      %s34 = sphi 0, %s31
      %s35 = sphi 0, %s34
      %s51 = sphi 0, %s35
      %s57 = sphi 0, %s59
      %s60 = sphi 0, %s57
      %s61 = sphi 0, %s60
      %s77 = sphi 0, %s61
      %s81 = sphi 0, %s81
      %s83 = sphi 0, %s81
      %s84 = sphi 0, %s83
      %s98 = sphi 0, %s84
      %s102 = sphi 0, %s102
      %s104 = sphi 0, %s102
      %s105 = sphi 0, %s104
      %s119 = sphi 0, %s105
      %s125 = sphi 0, %s127
      %s128 = sphi 0, %s125
      %s129 = sphi 0, %s128
      %s145 = sphi 0, %s129
      %s151 = sphi 0, %s153
      %s154 = sphi 0, %s151
      %s155 = sphi 0, %s154
      %s171 = sphi 0, %s155
      %s177 = sphi 0, %s179
      %s180 = sphi 0, %s177
      %s181 = sphi 0, %s180
      %s197 = sphi 0, %s181
    $region4: #{tpu_custom_call.1} parent=1 // loop_header_branch
      %24 = sbr.rel (%p22) target = $region8
    $region5: #{tpu_custom_call.1} parent=1 // loop_body
      %s26 = ssub.s32 %s21, 1
      %s27 = ssub.s32 %s21, 2
      %s28 = sadd.s32 %s21, 1
      %s29 = ssub.s32 %s21, %s28
      %p30 = scmp.eq.s32.totalorder %s29, 0
      %s32 = sadd.s32 %s31, 1
      %s33 = scalar_select %p30, %s31, %s32
      %p36 = pneg %p30
      %p37 = scmp.eq.s32.totalorder %s21, 1
      %p38 = por %p36, %p37
      %p39 = scmp.ne.s32.totalorder %s31, %s34
      %p40 = scmp.eq.s32.totalorder %s21, 0
      %p41 = por %p39, %p40
      %p42 = scmp.ne.s32.totalorder %s31, %s34
      %p43 = scmp.eq.s32.totalorder %s26, 1
      %p44 = por %p42, %p43
      %p45 = scmp.ne.s32.totalorder %s34, %s35
      %p46 = scmp.eq.s32.totalorder %s26, 0
      %p47 = por %p45, %p46
      %p48 = scmp.ne.s32.totalorder %s34, %s35
      %p49 = scmp.eq.s32.totalorder %s27, 1
      %p50 = por %p48, %p49
      %p52 = scmp.ne.s32.totalorder %s35, %s51
      %p53 = scmp.eq.s32.totalorder %s27, 0
      %p54 = por %p52, %p53
      %s55 = ssub.s32 %s21, %s28
      %p56 = scmp.eq.s32.totalorder %s55, 0
      %s58 = sadd.s32 %s57, 1
      %s59 = scalar_select %p56, %s57, %s58
      %p62 = pneg %p56
      %p63 = scmp.eq.s32.totalorder %s21, 1
      %p64 = por %p62, %p63
      %p65 = scmp.ne.s32.totalorder %s57, %s60
      %p66 = scmp.eq.s32.totalorder %s21, 0
      %p67 = por %p65, %p66
      %p68 = scmp.ne.s32.totalorder %s57, %s60
      %p69 = scmp.eq.s32.totalorder %s26, 1
      %p70 = por %p68, %p69
      %p71 = scmp.ne.s32.totalorder %s60, %s61
      %p72 = scmp.eq.s32.totalorder %s26, 0
      %p73 = por %p71, %p72
      %p74 = scmp.ne.s32.totalorder %s60, %s61
      %p75 = scmp.eq.s32.totalorder %s27, 1
      %p76 = por %p74, %p75
      %p78 = scmp.ne.s32.totalorder %s61, %s77
      %p79 = scmp.eq.s32.totalorder %s27, 0
      %p80 = por %p78, %p79
      %s82 = sadd.s32 %s81, 1
      %p85 = scmp.eq.s32.totalorder %s21, 1
      %p86 = scmp.ne.s32.totalorder %s81, %s83
      %p87 = scmp.eq.s32.totalorder %s21, 0
      %p88 = por %p86, %p87
      %p89 = scmp.ne.s32.totalorder %s81, %s83
      %p90 = scmp.eq.s32.totalorder %s26, 1
      %p91 = por %p89, %p90
      %p92 = scmp.ne.s32.totalorder %s83, %s84
      %p93 = scmp.eq.s32.totalorder %s26, 0
      %p94 = por %p92, %p93
      %p95 = scmp.ne.s32.totalorder %s83, %s84
      %p96 = scmp.eq.s32.totalorder %s27, 1
      %p97 = por %p95, %p96
      %p99 = scmp.ne.s32.totalorder %s84, %s98
      %p100 = scmp.eq.s32.totalorder %s27, 0
      %p101 = por %p99, %p100
      %s103 = sadd.s32 %s102, 1
      %p106 = scmp.eq.s32.totalorder %s21, 1
      %p107 = scmp.ne.s32.totalorder %s102, %s104
      %p108 = scmp.eq.s32.totalorder %s21, 0
      %p109 = por %p107, %p108
      %p110 = scmp.ne.s32.totalorder %s102, %s104
      %p111 = scmp.eq.s32.totalorder %s26, 1
      %p112 = por %p110, %p111
      %p113 = scmp.ne.s32.totalorder %s104, %s105
      %p114 = scmp.eq.s32.totalorder %s26, 0
      %p115 = por %p113, %p114
      %p116 = scmp.ne.s32.totalorder %s104, %s105
      %p117 = scmp.eq.s32.totalorder %s27, 1
      %p118 = por %p116, %p117
      %p120 = scmp.ne.s32.totalorder %s105, %s119
      %p121 = scmp.eq.s32.totalorder %s27, 0
      %p122 = por %p120, %p121
      %s123 = ssub.s32 %s21, %s28
      %p124 = scmp.eq.s32.totalorder %s123, 0
      %s126 = sadd.s32 %s125, 1
      %s127 = scalar_select %p124, %s125, %s126
      %p130 = pneg %p124
      %p131 = scmp.eq.s32.totalorder %s21, 1
      %p132 = por %p130, %p131
      %p133 = scmp.ne.s32.totalorder %s125, %s128
      %p134 = scmp.eq.s32.totalorder %s21, 0
      %p135 = por %p133, %p134
      %p136 = scmp.ne.s32.totalorder %s125, %s128
      %p137 = scmp.eq.s32.totalorder %s26, 1
      %p138 = por %p136, %p137
      %p139 = scmp.ne.s32.totalorder %s128, %s129
      %p140 = scmp.eq.s32.totalorder %s26, 0
      %p141 = por %p139, %p140
      %p142 = scmp.ne.s32.totalorder %s128, %s129
      %p143 = scmp.eq.s32.totalorder %s27, 1
      %p144 = por %p142, %p143
      %p146 = scmp.ne.s32.totalorder %s129, %s145
      %p147 = scmp.eq.s32.totalorder %s27, 0
      %p148 = por %p146, %p147
      %s149 = ssub.s32 %s21, %s28
      %p150 = scmp.eq.s32.totalorder %s149, 0
      %s152 = sadd.s32 %s151, 1
      %s153 = scalar_select %p150, %s151, %s152
      %p156 = pneg %p150
      %p157 = scmp.eq.s32.totalorder %s21, 1
      %p158 = por %p156, %p157
      %p159 = scmp.ne.s32.totalorder %s151, %s154
      %p160 = scmp.eq.s32.totalorder %s21, 0
      %p161 = por %p159, %p160
      %p162 = scmp.ne.s32.totalorder %s151, %s154
      %p163 = scmp.eq.s32.totalorder %s26, 1
      %p164 = por %p162, %p163
      %p165 = scmp.ne.s32.totalorder %s154, %s155
      %p166 = scmp.eq.s32.totalorder %s26, 0
      %p167 = por %p165, %p166
      %p168 = scmp.ne.s32.totalorder %s154, %s155
      %p169 = scmp.eq.s32.totalorder %s27, 1
      %p170 = por %p168, %p169
      %p172 = scmp.ne.s32.totalorder %s155, %s171
      %p173 = scmp.eq.s32.totalorder %s27, 0
      %p174 = por %p172, %p173
      %s175 = ssub.s32 %s21, %s28
      %p176 = scmp.eq.s32.totalorder %s175, 0
      %s178 = sadd.s32 %s177, 1
      %s179 = scalar_select %p176, %s177, %s178
      %p182 = pneg %p176
      %p183 = scmp.eq.s32.totalorder %s21, 1
      %p184 = por %p182, %p183
      %p185 = scmp.ne.s32.totalorder %s177, %s180
      %p186 = scmp.eq.s32.totalorder %s21, 0
      %p187 = por %p185, %p186
      %p188 = scmp.ne.s32.totalorder %s177, %s180
      %p189 = scmp.eq.s32.totalorder %s26, 1
      %p190 = por %p188, %p189
      %p191 = scmp.ne.s32.totalorder %s180, %s181
      %p192 = scmp.eq.s32.totalorder %s26, 0
      %p193 = por %p191, %p192
      %p194 = scmp.ne.s32.totalorder %s180, %s181
      %p195 = scmp.eq.s32.totalorder %s27, 1
      %p196 = por %p194, %p195
      %p198 = scmp.ne.s32.totalorder %s181, %s197
      %p199 = scmp.eq.s32.totalorder %s27, 0
      %p200 = por %p198, %p199
      %p201 = scmp.le.s32.totalorder 1, %s21
      %p202 = scmp.lt.s32.totalorder %s21, 3
      %p203 = pnand %p201, %p202
      %p204 = pneg %p203
      // Predicated region
      $region9: #{tpu_custom_call.1} parent=5 // pred_check
        _
      $region10: #{tpu_custom_call.1} parent=5 // pred_check_branch
        %206 = sbr.rel (%p203) target = $region12
      $region11: #{tpu_custom_call.1} parent=5 // pred_region
        %s207 = ssub.s32 %s21, 1
        // Predicated region
        $region13: #{tpu_custom_call.1} parent=11 // pred_check
          %p208 = pneg %p94
        $region14: #{tpu_custom_call.1} parent=11 // pred_check_branch
          %210 = sbr.rel (%p208) target = $region16
        $region15: #{tpu_custom_call.1} parent=11 // pred_region
          %212 = vsyncadd [#allocation3], 0
          %s213 = sshll.u32 %s2, 4
          %s214 = int_to_ptr.hbm [resolvable:$true] %s213
          %s215 = sshll.u32 [#allocation2], 4
          %s216 = int_to_ptr.vmem [resolvable:$true] %s215
          %221 = dma.hbm_to_vmem [thread:$0]  %s214, 3072, %s216, [#allocation3], 64, 64, 4
        $region16: #{tpu_custom_call.1} parent=11 // pred_fallthru
          _
        // Predicated region
        $region17: #{tpu_custom_call.1} parent=11 // pred_check
          %p222 = pneg %p115
        $region18: #{tpu_custom_call.1} parent=11 // pred_check_branch
          %224 = sbr.rel (%p222) target = $region20
        $region19: #{tpu_custom_call.1} parent=11 // pred_region
          %226 = vsyncadd [#allocation6], 0
          %s227 = sshll.u32 %s3, 4
          %s228 = int_to_ptr.hbm [resolvable:$true] %s227
          %s229 = sshll.u32 [#allocation5], 4
          %s230 = int_to_ptr.vmem [resolvable:$true] %s229
          %235 = dma.hbm_to_vmem [thread:$0]  %s228, 1024, %s230, [#allocation6], 64, 64, 4
        $region20: #{tpu_custom_call.1} parent=11 // pred_fallthru
          _
      $region12: #{tpu_custom_call.1} parent=5 // pred_fallthru
        _
      %p236 = scmp.lt.s32.totalorder %s21, 2
      // Predicated region
      $region21: #{tpu_custom_call.1} parent=5 // pred_check
        %p237 = pneg %p236
      $region22: #{tpu_custom_call.1} parent=5 // pred_check_branch
        %239 = sbr.rel (%p237) target = $region24
      $region23: #{tpu_custom_call.1} parent=5 // pred_region
        // Predicated region
        $region25: #{tpu_custom_call.1} parent=23 // pred_check
          %p240 = pneg %p41
        $region26: #{tpu_custom_call.1} parent=23 // pred_check_branch
          %242 = sbr.rel (%p240) target = $region28
        $region27: #{tpu_custom_call.1} parent=23 // pred_region
          %p243 = scmp.lt.s32.totalorder %s21, 1
          %s244 = scalar_select %p243, %s21, 1
          %s245 = smul.addr %s244, 2
          %s246 = smul.addr %s245, 4
          %s247 = scalar_lea.vmem %s0, %s246
        $region28: #{tpu_custom_call.1} parent=23 // pred_fallthru
          _
        // Predicated region
        $region29: #{tpu_custom_call.1} parent=23 // pred_check
          %p248 = pneg %p67
        $region30: #{tpu_custom_call.1} parent=23 // pred_check_branch
          %250 = sbr.rel (%p248) target = $region32
        $region31: #{tpu_custom_call.1} parent=23 // pred_region
          %p251 = scmp.lt.s32.totalorder %s21, 1
          %s252 = scalar_select %p251, %s21, 1
          %s253 = smul.addr %s252, 4
          %s254 = scalar_lea.vmem %s1, %s253
        $region32: #{tpu_custom_call.1} parent=23 // pred_fallthru
          _
      $region24: #{tpu_custom_call.1} parent=5 // pred_fallthru
        _
      %p255 = scmp.le.s32.totalorder 1, %s21
      %p256 = scmp.lt.s32.totalorder %s21, 3
      %p257 = pnand %p255, %p256
      %p258 = pneg %p257
      // Predicated region
      $region33: #{tpu_custom_call.1} parent=5 // pred_check
        _
      $region34: #{tpu_custom_call.1} parent=5 // pred_check_branch
        %260 = sbr.rel (%p257) target = $region36
      $region35: #{tpu_custom_call.1} parent=5 // pred_region
        %s261 = ssub.s32 %s21, 1
        // Predicated region
        $region37: #{tpu_custom_call.1} parent=35 // pred_check
          %p262 = pneg %p94
        $region38: #{tpu_custom_call.1} parent=35 // pred_check_branch
          %264 = sbr.rel (%p262) target = $region40
        $region39: #{tpu_custom_call.1} parent=35 // pred_region
          %266 = dma.done [#allocation3], 3072
        $region40: #{tpu_custom_call.1} parent=35 // pred_fallthru
          _
        // Predicated region
        $region41: #{tpu_custom_call.1} parent=35 // pred_check
          %p267 = pneg %p115
        $region42: #{tpu_custom_call.1} parent=35 // pred_check_branch
          %269 = sbr.rel (%p267) target = $region44
        $region43: #{tpu_custom_call.1} parent=35 // pred_region
          %271 = dma.done [#allocation6], 1024
        $region44: #{tpu_custom_call.1} parent=35 // pred_fallthru
          _
        %p272 = scmp.lt.s32.totalorder %s26, 1
        %s273 = scalar_select %p272, %s26, 1
        %s274 = smul.addr %s273, 2
        %s275 = smul.addr %s274, 4
        %s276 = scalar_lea.vmem %s0, %s275
        %p277 = pneg %p47
        %p278 = pneg %p44
        %p279 = scmp.lt.s32.totalorder %s26, 1
        %s280 = scalar_select %p279, %s26, 1
        %s281 = smul.addr %s280, 4
        %s282 = scalar_lea.vmem %s1, %s281
        %p283 = pneg %p73
        %p284 = pneg %p70
        %p285 = pneg %p94
        %p286 = pneg %p91
        %p287 = pneg %p115
        %p288 = pneg %p112
        %p289 = pneg %p141
        %p290 = pneg %p138
        %s291 = sand.u32 %s128, 1
        %s292 = scalar_lea.sflag [#allocation4], %s291
        %s293 = sand.u32 %s128, 1
        %s294 = smul.addr %s293, 4
        %s295 = scalar_lea.vmem [#allocation7], %s294
        %p296 = pneg %p167
        %p297 = pneg %p164
        %s298 = sand.u32 %s26, 1
        %s299 = scalar_lea.sflag [#allocation9], %s298
        %s300 = sand.u32 %s154, 1
        %s301 = smul.addr %s300, 4
        %s302 = scalar_lea.vmem [#allocation8], %s301
        %p303 = pneg %p193
        %p304 = pneg %p190
        %s305 = sand.u32 %s26, 1
        %s306 = scalar_lea.sflag [#allocation9], %s305
        %s307 = sand.u32 %s180, 1
        %s308 = smul.addr %s307, 8
        %s309 = scalar_lea.vmem [#allocation10], %s308
        %p310 = scmp.lt.s32.totalorder %s26, 1
        %s311 = scalar_select %p310, %s26, 1
        %s312 = smul.addr %s311, 2
        %s313 = smul.addr %s312, 4
        %s314 = scalar_lea.vmem %s0, %s313
        %p315 = scmp.lt.s32.totalorder %s26, 1
        %s316 = scalar_select %p315, %s26, 1
        %s317 = smul.addr %s316, 4
        %s318 = scalar_lea.vmem %s1, %s317
        %v319 = vld [vmem:[%s314] sm:$0xf]
        %v320 = vld [vmem:[%s318] sm:$0xf]
        %v321 = vld [vmem:[%s314 + $0x4] sm:$0x1]
        %v322 = vld [vmem:[#allocation2] sm:$0xf]
        %v323 = vld [vmem:[#allocation2 + $0x4] sm:$0xf]
        %v324 = vld [vmem:[#allocation2 + $0x8] sm:$0xf]
        %v325 = vld [vmem:[#allocation2 + $0xc] sm:$0xf]
        %v326 = vld [vmem:[#allocation2 + $0x10] sm:$0xf]
        %v327 = vld [vmem:[#allocation2 + $0x14] sm:$0xf]
        %v328 = vld [vmem:[#allocation2 + $0x18] sm:$0xf]
        %v329 = vld [vmem:[#allocation2 + $0x1c] sm:$0xf]
        %v330 = vld [vmem:[#allocation2 + $0x20] sm:$0xf]
        %v331 = vld [vmem:[#allocation2 + $0x24] sm:$0xf]
        %v332 = vld [vmem:[#allocation2 + $0x28] sm:$0xf]
        %v333 = vld [vmem:[#allocation2 + $0x2c] sm:$0xf]
        %v334 = vld [vmem:[#allocation2 + $0x30] sm:$0xf]
        %v335 = vld [vmem:[#allocation2 + $0x34] sm:$0xf]
        %v336 = vld [vmem:[#allocation2 + $0x38] sm:$0xf]
        %v337 = vld [vmem:[#allocation2 + $0x3c] sm:$0xf]
        %v338 = vld [vmem:[#allocation2 + $0x40] sm:$0xf]
        %v339 = vld [vmem:[#allocation2 + $0x44] sm:$0xf]
        %v340 = vld [vmem:[#allocation2 + $0x48] sm:$0xf]
        %v341 = vld [vmem:[#allocation2 + $0x4c] sm:$0xf]
        %v342 = vld [vmem:[#allocation2 + $0x50] sm:$0xf]
        %v343 = vld [vmem:[#allocation2 + $0x54] sm:$0xf]
        %v344 = vld [vmem:[#allocation2 + $0x58] sm:$0xf]
        %v345 = vld [vmem:[#allocation2 + $0x5c] sm:$0xf]
        %v346 = vld [vmem:[#allocation2 + $0x60] sm:$0xf]
        %v347 = vld [vmem:[#allocation2 + $0x64] sm:$0xf]
        %v348 = vld [vmem:[#allocation2 + $0x68] sm:$0xf]
        %v349 = vld [vmem:[#allocation2 + $0x6c] sm:$0xf]
        %v350 = vld [vmem:[#allocation2 + $0x70] sm:$0xf]
        %v351 = vld [vmem:[#allocation2 + $0x74] sm:$0xf]
        %v352 = vld [vmem:[#allocation2 + $0x78] sm:$0xf]
        %v353 = vld [vmem:[#allocation2 + $0x7c] sm:$0xf]
        %v370 = vunpack.c.l.b16 %v338
        %v371 = vunpack.c.l.b16 %v339
        %v372 = vunpack.c.l.b16 %v340
        %v373 = vunpack.c.l.b16 %v341
        %v374 = vunpack.c.l.b16 %v342
        %v375 = vunpack.c.l.b16 %v343
        %v376 = vunpack.c.l.b16 %v344
        %v377 = vunpack.c.l.b16 %v345
        %v378 = vunpack.c.l.b16 %v346
        %v379 = vunpack.c.l.b16 %v347
        %v380 = vunpack.c.l.b16 %v348
        %v381 = vunpack.c.l.b16 %v349
        %v382 = vunpack.c.l.b16 %v350
        %v383 = vunpack.c.l.b16 %v351
        %v384 = vunpack.c.l.b16 %v352
        %v385 = vunpack.c.l.b16 %v353
        %v386 = vpack.c.b16 %v371, %v370
        %v387 = vpack.c.b16 %v373, %v372
        %v388 = vpack.c.b16 %v375, %v374
        %v389 = vpack.c.b16 %v377, %v376
        %v390 = vpack.c.b16 %v379, %v378
        %v391 = vpack.c.b16 %v381, %v380
        %v392 = vpack.c.b16 %v383, %v382
        %v393 = vpack.c.b16 %v385, %v384
        %402 = vmatpush.bf16.msra.mxu0 %v393
        %403 = vmatpush.bf16.msra.mxu0 %v392
        %404 = vmatpush.bf16.msra.mxu0 %v391
        %405 = vmatpush.bf16.msra.mxu0 %v390
        %406 = vmatpush.bf16.msra.mxu0 %v389
        %407 = vmatpush.bf16.msra.mxu0 %v388
        %408 = vmatpush.bf16.msra.mxu0 %v387
        %409 = vmatpush.bf16.msra.mxu0 %v386
        %410 = vmatmul.bf16.gmra.mxu0 %v320
        %v411 = vpop.f32.mrf.mxu0
        %v412 = vadd.f32 0.0, %v411
        %v413 = vpop.f32.mrf.mxu0
        %414 = vdwg.mxu0
        %v431 = vunpack.c.l.b16 %v322
        %v432 = vunpack.c.l.b16 %v323
        %v433 = vunpack.c.l.b16 %v324
        %v434 = vunpack.c.l.b16 %v325
        %v435 = vunpack.c.l.b16 %v326
        %v436 = vunpack.c.l.b16 %v327
        %v437 = vunpack.c.l.b16 %v328
        %v438 = vunpack.c.l.b16 %v329
        %v439 = vunpack.c.l.b16 %v330
        %v440 = vunpack.c.l.b16 %v331
        %v441 = vunpack.c.l.b16 %v332
        %v442 = vunpack.c.l.b16 %v333
        %v443 = vunpack.c.l.b16 %v334
        %v444 = vunpack.c.l.b16 %v335
        %v445 = vunpack.c.l.b16 %v336
        %v446 = vunpack.c.l.b16 %v337
        %v447 = vpack.c.b16 %v432, %v431
        %v448 = vpack.c.b16 %v434, %v433
        %v449 = vpack.c.b16 %v436, %v435
        %v450 = vpack.c.b16 %v438, %v437
        %v451 = vpack.c.b16 %v440, %v439
        %v452 = vpack.c.b16 %v442, %v441
        %v453 = vpack.c.b16 %v444, %v443
        %v454 = vpack.c.b16 %v446, %v445
        %463 = vmatpush.bf16.msra.mxu0 %v454
        %464 = vmatpush.bf16.msra.mxu0 %v453
        %465 = vmatpush.bf16.msra.mxu0 %v452
        %466 = vmatpush.bf16.msra.mxu0 %v451
        %467 = vmatpush.bf16.msra.mxu0 %v450
        %468 = vmatpush.bf16.msra.mxu0 %v449
        %469 = vmatpush.bf16.msra.mxu0 %v448
        %470 = vmatpush.bf16.msra.mxu0 %v447
        %471 = vmatmul.bf16.gmra.mxu0 %v319
        %v472 = vpop.f32.mrf.mxu0
        %v473 = vadd.f32 %v412, %v472
        %v474 = vpop.f32.mrf.mxu0
        %475 = vdwg.mxu0
        %v476 = vld [vmem:[#allocation2 + $0x80] sm:$0xf]
        %v477 = vld [vmem:[#allocation2 + $0x84] sm:$0xf]
        %v478 = vld [vmem:[#allocation2 + $0x88] sm:$0xf]
        %v479 = vld [vmem:[#allocation2 + $0x8c] sm:$0xf]
        %v480 = vld [vmem:[#allocation2 + $0x90] sm:$0xf]
        %v481 = vld [vmem:[#allocation2 + $0x94] sm:$0xf]
        %v482 = vld [vmem:[#allocation2 + $0x98] sm:$0xf]
        %v483 = vld [vmem:[#allocation2 + $0x9c] sm:$0xf]
        %v484 = vld [vmem:[#allocation2 + $0xa0] sm:$0xf]
        %v485 = vld [vmem:[#allocation2 + $0xa4] sm:$0xf]
        %v486 = vld [vmem:[#allocation2 + $0xa8] sm:$0xf]
        %v487 = vld [vmem:[#allocation2 + $0xac] sm:$0xf]
        %v488 = vld [vmem:[#allocation2 + $0xb0] sm:$0xf]
        %v489 = vld [vmem:[#allocation2 + $0xb4] sm:$0xf]
        %v490 = vld [vmem:[#allocation2 + $0xb8] sm:$0xf]
        %v491 = vld [vmem:[#allocation2 + $0xbc] sm:$0xf]
        %v494 = vunpack.c.l.b16 %v319
        %v495 = vunpack.c.l.b16 %v321
        %v496 = vpack.c.b16 %v495, %v494
        %v498 = vshrl.u32 %v496, 16
        %v500 = vshll.u32 %v496, 16
        %v502 = vrot.slane %v500, 1
        %v503 = vor.u32 %v498, %v502
        %v521 = vunpack.c.l.b16 %v476
        %v522 = vunpack.c.l.b16 %v477
        %v523 = vunpack.c.l.b16 %v478
        %v524 = vunpack.c.l.b16 %v479
        %v525 = vunpack.c.l.b16 %v480
        %v526 = vunpack.c.l.b16 %v481
        %v527 = vunpack.c.l.b16 %v482
        %v528 = vunpack.c.l.b16 %v483
        %v529 = vunpack.c.l.b16 %v484
        %v530 = vunpack.c.l.b16 %v485
        %v531 = vunpack.c.l.b16 %v486
        %v532 = vunpack.c.l.b16 %v487
        %v533 = vunpack.c.l.b16 %v488
        %v534 = vunpack.c.l.b16 %v489
        %v535 = vunpack.c.l.b16 %v490
        %v536 = vunpack.c.l.b16 %v491
        %v537 = vpack.c.b16 %v522, %v521
        %v538 = vpack.c.b16 %v524, %v523
        %v539 = vpack.c.b16 %v526, %v525
        %v540 = vpack.c.b16 %v528, %v527
        %v541 = vpack.c.b16 %v530, %v529
        %v542 = vpack.c.b16 %v532, %v531
        %v543 = vpack.c.b16 %v534, %v533
        %v544 = vpack.c.b16 %v536, %v535
        %553 = vmatpush.bf16.msra.mxu0 %v544
        %554 = vmatpush.bf16.msra.mxu0 %v543
        %555 = vmatpush.bf16.msra.mxu0 %v542
        %556 = vmatpush.bf16.msra.mxu0 %v541
        %557 = vmatpush.bf16.msra.mxu0 %v540
        %558 = vmatpush.bf16.msra.mxu0 %v539
        %559 = vmatpush.bf16.msra.mxu0 %v538
        %560 = vmatpush.bf16.msra.mxu0 %v537
        %561 = vmatmul.bf16.gmra.mxu0 %v503
        %v562 = vpop.f32.mrf.mxu0
        %v563 = vadd.f32 0.0, %v562
        %v564 = vpop.f32.mrf.mxu0
        %565 = vdwg.mxu0
        %v566 = vadd.f32 %v473, %v563
        %v567 = vpack.c.bf16 %v566, %v566
        %568 = vst [vmem:[%s295] sm:$0xf] %v567
        %v569 = vrot.slane %v566, 4
        %v570 = vadd.f32 %v566, %v569
        %v571 = vrot.slane %v570, 2
        %v572 = vadd.f32 %v570, %v571
        %v573 = vrot.slane %v572, 1
        %v574 = vadd.f32 %v572, %v573
        %v575 = vmul.f32 %v566, %v566
        %v576 = vrot.slane %v575, 4
        %v577 = vadd.f32 %v575, %v576
        %v578 = vrot.slane %v577, 2
        %v579 = vadd.f32 %v577, %v578
        %v580 = vrot.slane %v579, 1
        %v581 = vadd.f32 %v579, %v580
        %v582 = vld [vmem:[#allocation5] sm:$0xf]
        %v583 = vld [vmem:[#allocation5 + $0x4] sm:$0xf]
        %v584 = vld [vmem:[#allocation5 + $0x8] sm:$0xf]
        %v585 = vld [vmem:[#allocation5 + $0xc] sm:$0xf]
        %v586 = vld [vmem:[#allocation5 + $0x10] sm:$0xf]
        %v587 = vld [vmem:[#allocation5 + $0x14] sm:$0xf]
        %v588 = vld [vmem:[#allocation5 + $0x18] sm:$0xf]
        %v589 = vld [vmem:[#allocation5 + $0x1c] sm:$0xf]
        %v590 = vld [vmem:[#allocation5 + $0x20] sm:$0xf]
        %v591 = vld [vmem:[#allocation5 + $0x24] sm:$0xf]
        %v592 = vld [vmem:[#allocation5 + $0x28] sm:$0xf]
        %v593 = vld [vmem:[#allocation5 + $0x2c] sm:$0xf]
        %v594 = vld [vmem:[#allocation5 + $0x30] sm:$0xf]
        %v595 = vld [vmem:[#allocation5 + $0x34] sm:$0xf]
        %v596 = vld [vmem:[#allocation5 + $0x38] sm:$0xf]
        %v597 = vld [vmem:[#allocation5 + $0x3c] sm:$0xf]
        %v614 = vunpack.c.l.b16 %v582
        %v615 = vunpack.c.l.b16 %v583
        %v616 = vunpack.c.l.b16 %v584
        %v617 = vunpack.c.l.b16 %v585
        %v618 = vunpack.c.l.b16 %v586
        %v619 = vunpack.c.l.b16 %v587
        %v620 = vunpack.c.l.b16 %v588
        %v621 = vunpack.c.l.b16 %v589
        %v622 = vunpack.c.l.b16 %v590
        %v623 = vunpack.c.l.b16 %v591
        %v624 = vunpack.c.l.b16 %v592
        %v625 = vunpack.c.l.b16 %v593
        %v626 = vunpack.c.l.b16 %v594
        %v627 = vunpack.c.l.b16 %v595
        %v628 = vunpack.c.l.b16 %v596
        %v629 = vunpack.c.l.b16 %v597
        %v630 = vpack.c.b16 %v615, %v614
        %v631 = vpack.c.b16 %v617, %v616
        %v632 = vpack.c.b16 %v619, %v618
        %v633 = vpack.c.b16 %v621, %v620
        %v634 = vpack.c.b16 %v623, %v622
        %v635 = vpack.c.b16 %v625, %v624
        %v636 = vpack.c.b16 %v627, %v626
        %v637 = vpack.c.b16 %v629, %v628
        %646 = vmatpush.bf16.msra.mxu0 %v637
        %647 = vmatpush.bf16.msra.mxu0 %v636
        %648 = vmatpush.bf16.msra.mxu0 %v635
        %649 = vmatpush.bf16.msra.mxu0 %v634
        %650 = vmatpush.bf16.msra.mxu0 %v633
        %651 = vmatpush.bf16.msra.mxu0 %v632
        %652 = vmatpush.bf16.msra.mxu0 %v631
        %653 = vmatpush.bf16.msra.mxu0 %v630
        %654 = vmatmul.bf16.gmra.mxu0 %v320
        %v655 = vpop.f32.mrf.mxu0
        %v656 = vadd.f32 0.0, %v655
        %v657 = vpop.f32.mrf.mxu0
        %658 = vdwg.mxu0
        %v659 = vpack.c.bf16 %v656, %v656
        %660 = vst [vmem:[%s302] sm:$0xf] %v659
        %v661 = vrot.slane %v656, 4
        %v662 = vadd.f32 %v656, %v661
        %v663 = vrot.slane %v662, 2
        %v664 = vadd.f32 %v662, %v663
        %v665 = vrot.slane %v664, 1
        %v666 = vadd.f32 %v664, %v665
        %v667 = vmul.f32 %v656, %v656
        %v668 = vrot.slane %v667, 4
        %v669 = vadd.f32 %v667, %v668
        %v670 = vrot.slane %v669, 2
        %v671 = vadd.f32 %v669, %v670
        %v672 = vrot.slane %v671, 1
        %v673 = vadd.f32 %v671, %v672
        %vm674 = vcmask 1040384
        %v675 = vsel %vm674, %v574, %v581
        %vm676 = vcmask 1041408
        %v677 = vsel %vm676, %v675, %v666
        %vm678 = vcmask 1042432
        %v679 = vsel %vm678, %v677, %v673
        %vm680 = vcmask 1043456
        %v681 = vsel %vm680, %v679, 0.0
        %682 = vst [vmem:[%s309] sm:$0xff] %v681
        %s683 = sand.u32 %s128, 1
        %s684 = scalar_lea.sflag [#allocation4], %s683
        %s685 = sand.u32 %s128, 1
        %s686 = smul.addr %s685, 4
        %s687 = scalar_lea.vmem [#allocation7], %s686
        %s688 = sand.u32 %s26, 1
        %s689 = scalar_lea.sflag [#allocation9], %s688
        %s690 = sand.u32 %s154, 1
        %s691 = smul.addr %s690, 4
        %s692 = scalar_lea.vmem [#allocation8], %s691
        %s693 = sand.u32 %s26, 1
        %s694 = scalar_lea.sflag [#allocation9], %s693
        %s695 = sand.u32 %s180, 1
        %s696 = smul.addr %s695, 8
        %s697 = scalar_lea.vmem [#allocation10], %s696
        // Predicated region
        $region45: #{tpu_custom_call.1} parent=35 // pred_check
          %p698 = pneg %p138
        $region46: #{tpu_custom_call.1} parent=35 // pred_check_branch
          %700 = sbr.rel (%p698) target = $region48
        $region47: #{tpu_custom_call.1} parent=35 // pred_region
          %702 = vsyncadd %s684, 0
          %s703 = smul.addr %s26, 4
          %s704 = scalar_lea.hbm %s4, %s703
          %s706 = sshll.u32 %s687, 4
          %s707 = int_to_ptr.vmem [resolvable:$true] %s706
          %s708 = sshll.u32 %s704, 4
          %s709 = int_to_ptr.hbm [resolvable:$true] %s708
          %711 = dma.vmem_to_hbm [thread:$0]  %s707, 64, %s709, %s684
        $region48: #{tpu_custom_call.1} parent=35 // pred_fallthru
          _
        // Predicated region
        $region49: #{tpu_custom_call.1} parent=35 // pred_check
          %p712 = pneg %p164
        $region50: #{tpu_custom_call.1} parent=35 // pred_check_branch
          %714 = sbr.rel (%p712) target = $region52
        $region51: #{tpu_custom_call.1} parent=35 // pred_region
          %716 = vsyncadd %s689, 0
          %s717 = smul.addr %s26, 4
          %s718 = scalar_lea.hbm %s5, %s717
          %s720 = sshll.u32 %s692, 4
          %s721 = int_to_ptr.vmem [resolvable:$true] %s720
          %s722 = sshll.u32 %s718, 4
          %s723 = int_to_ptr.hbm [resolvable:$true] %s722
          %725 = dma.vmem_to_hbm [thread:$0]  %s721, 64, %s723, %s689
        $region52: #{tpu_custom_call.1} parent=35 // pred_fallthru
          _
        // Predicated region
        $region53: #{tpu_custom_call.1} parent=35 // pred_check
          %p726 = pneg %p190
        $region54: #{tpu_custom_call.1} parent=35 // pred_check_branch
          %728 = sbr.rel (%p726) target = $region56
        $region55: #{tpu_custom_call.1} parent=35 // pred_region
          %730 = vsyncadd %s694, 0
          %s731 = smul.addr %s26, 8
          %s732 = scalar_lea.hbm %s6, %s731
          %s734 = sshll.u32 %s697, 4
          %s735 = int_to_ptr.vmem [resolvable:$true] %s734
          %s736 = sshll.u32 %s732, 4
          %s737 = int_to_ptr.hbm [resolvable:$true] %s736
          %739 = dma.vmem_to_hbm [thread:$0]  %s735, 128, %s737, %s694
        $region56: #{tpu_custom_call.1} parent=35 // pred_fallthru
          _
      $region36: #{tpu_custom_call.1} parent=5 // pred_fallthru
        _
      %p740 = scmp.le.s32.totalorder 2, %s21
      // Predicated region
      $region57: #{tpu_custom_call.1} parent=5 // pred_check
        %p741 = pneg %p740
      $region58: #{tpu_custom_call.1} parent=5 // pred_check_branch
        %743 = sbr.rel (%p741) target = $region60
      $region59: #{tpu_custom_call.1} parent=5 // pred_region
        %s744 = ssub.s32 %s21, 2
        // Predicated region
        $region61: #{tpu_custom_call.1} parent=59 // pred_check
          %p745 = pneg %p144
        $region62: #{tpu_custom_call.1} parent=59 // pred_check_branch
          %747 = sbr.rel (%p745) target = $region64
        $region63: #{tpu_custom_call.1} parent=59 // pred_region
          %s748 = sand.u32 %s129, 1
          %s749 = scalar_lea.sflag [#allocation4], %s748
          %s750 = sand.u32 %s129, 1
          %s751 = smul.addr %s750, 4
          %s752 = scalar_lea.vmem [#allocation7], %s751
          %754 = dma.done %s749, 64
        $region64: #{tpu_custom_call.1} parent=59 // pred_fallthru
          _
        // Predicated region
        $region65: #{tpu_custom_call.1} parent=59 // pred_check
          %p755 = pneg %p170
        $region66: #{tpu_custom_call.1} parent=59 // pred_check_branch
          %757 = sbr.rel (%p755) target = $region68
        $region67: #{tpu_custom_call.1} parent=59 // pred_region
          %s758 = sand.u32 %s27, 1
          %s759 = scalar_lea.sflag [#allocation9], %s758
          %s760 = sand.u32 %s155, 1
          %s761 = smul.addr %s760, 4
          %s762 = scalar_lea.vmem [#allocation8], %s761
          %764 = dma.done %s759, 64
        $region68: #{tpu_custom_call.1} parent=59 // pred_fallthru
          _
        // Predicated region
        $region69: #{tpu_custom_call.1} parent=59 // pred_check
          %p765 = pneg %p196
        $region70: #{tpu_custom_call.1} parent=59 // pred_check_branch
          %767 = sbr.rel (%p765) target = $region72
        $region71: #{tpu_custom_call.1} parent=59 // pred_region
          %s768 = sand.u32 %s27, 1
          %s769 = scalar_lea.sflag [#allocation9], %s768
          %s770 = sand.u32 %s181, 1
          %s771 = smul.addr %s770, 8
          %s772 = scalar_lea.vmem [#allocation10], %s771
          %774 = dma.done %s769, 128
        $region72: #{tpu_custom_call.1} parent=59 // pred_fallthru
          _
      $region60: #{tpu_custom_call.1} parent=5 // pred_fallthru
        _
    $region6: #{tpu_custom_call.1} parent=1 // loop_footer
      %s25 = sadd.s32 1, %s21
    $region7: #{tpu_custom_call.1} parent=1 // loop_footer_branch
      %20 = sbr.rel target = $region3
    $region8: #{tpu_custom_call.1} parent=1 // loop_exit
      _
    %775 = vsyncpa [#allocation3], 1
    %s776 = scalar_lea.sflag [#allocation3], 1
    %777 = vsyncpa %s776, 1
    %778 = vsyncpa [#allocation6], 1
    %779 = vsyncpa [#allocation4], 1
    %s780 = scalar_lea.sflag [#allocation4], 1
    %781 = vsyncpa %s780, 1
    %782 = vsyncpa [#allocation9], 1
    %s783 = scalar_lea.sflag [#allocation9], 1
    %784 = vsyncpa %s783, 1

</llo_original>
